<compile_context>
chip_gen: v7x
topology: tpu7x:2x2x1
jax: 0.10.0
libtpu: 0.0.40
codegen_flags: <defaults>
</compile_context>

<pallas_src>
import jax
import jax.numpy as jnp
from jax.experimental import pallas as pl
from jax.experimental.pallas import tpu as pltpu


# ---------------------------------------------------------------------------
# Pallas kernel: fused Cell forward (2 MXU matmuls + VPU scaling/bias/ReLU)
# ---------------------------------------------------------------------------
def _cell_kernel(x_ref, adj_ref, dinv_ref, wblk_ref, bf_ref, bg_ref, out_ref):
    f32 = jnp.float32

    # Fused preprocess + GCN feature transform (block-diagonal weights):
    #   H = [h0 | h1] = X @ blkdiag(W0@Wg0, W1@Wg1) + [b0@Wg0 | b1@Wg1]
    h = jnp.dot(x_ref[...], wblk_ref[...], preferred_element_type=f32) + bf_ref[...]

    # GCN aggregation with normalization folded in on the VPU:
    #   A_norm @ H = dinv * ((A + I) @ (dinv * H))
    dinv = dinv_ref[...]                                   # (N, 1)
    hs = dinv * h
    st = dinv * jnp.dot(adj_ref[...], hs, preferred_element_type=f32) + bg_ref[...]

    # concat == 'concat' -> relu(cat(st2, st3)); ST is already in concatenated
    # layout, so this is one unmasked lane-dense 128-wide store.
    out_ref[...] = jnp.maximum(st, 0.0)


def cell_forward(s0, s1, adj_self, dinv, params):
    """Fused Cell forward as one pallas_call (full-array VMEM blocks)."""
    n = s0.shape[0]
    hidden = params["wg0"].shape[1]
    out_dim = 2 * hidden

    # Host-side algebraic fusion (tiny constant folding, runs once per call).
    wf0 = params["w0"] @ params["wg0"]                     # (his, hidden)
    wf1 = params["w1"] @ params["wg1"]                     # (cur, hidden)
    bf = jnp.concatenate([params["b0"] @ params["wg0"],
                          params["b1"] @ params["wg1"]], axis=1)   # (1, 2h)
    bg = jnp.concatenate([params["bg0"], params["bg1"]], axis=1)   # (1, 2h)

    his, cur = wf0.shape[0], wf1.shape[0]
    wblk = jnp.zeros((his + cur, out_dim), jnp.float32)
    wblk = wblk.at[:his, :hidden].set(wf0)
    wblk = wblk.at[his:, hidden:].set(wf1)

    x = jnp.concatenate([s0, s1], axis=1)                  # (N, his+cur)

    vmem = pl.BlockSpec(memory_space=pltpu.MemorySpace.VMEM)
    return pl.pallas_call(
        _cell_kernel,
        out_shape=jax.ShapeDtypeStruct((n, out_dim), jnp.float32),
        in_specs=[vmem] * 6,
        out_specs=vmem,
    )(x, adj_self, dinv, wblk, bf, bg)


# ---------------------------------------------------------------------------
# Glue: parameter init, raw adjacency (+ self loops) and degree scaling
# ---------------------------------------------------------------------------
def init_params(key, his_dim, cur_dim, hidden_dim):
    """Deterministic init mirroring nn.Linear shapes; weights stored (in, out)."""
    ks = jax.random.split(key, 8)

    def lin(kw, kb, fan_in, fan_out):
        bound = 1.0 / jnp.sqrt(jnp.float32(fan_in))
        w = jax.random.uniform(kw, (fan_in, fan_out), jnp.float32, -bound, bound)
        b = jax.random.uniform(kb, (1, fan_out), jnp.float32, -bound, bound)
        return w, b

    w0, b0 = lin(ks[0], ks[1], his_dim, hidden_dim)        # preprocess0
    w1, b1 = lin(ks[2], ks[3], cur_dim, hidden_dim)        # preprocess1
    wg0, bg0 = lin(ks[4], ks[5], hidden_dim, hidden_dim)   # gcn step 0
    wg1, bg1 = lin(ks[6], ks[7], hidden_dim, hidden_dim)   # gcn step 1
    return dict(w0=w0, b0=b0, w1=w1, b1=b1,
                wg0=wg0, bg0=bg0, wg1=wg1, bg1=bg1)


def build_adj(edge_index, num_nodes):
    """Dense A+I (A[tgt, src] = 1, message src -> tgt) and dinv = 1/sqrt(deg).

    The normalized adjacency D^-1/2 (A+I) D^-1/2 is NOT materialized; the
    dinv scaling is applied inside the Pallas kernel on the VPU.
    """
    src, tgt = edge_index[0], edge_index[1]
    a = jnp.zeros((num_nodes, num_nodes), jnp.float32)
    a = a.at[tgt, src].set(1.0)
    idx = jnp.arange(num_nodes)
    a = a.at[idx, idx].set(1.0)                            # self-loops
    deg = a.sum(axis=1)
    dinv = (1.0 / jnp.sqrt(deg)).reshape(num_nodes, 1)
    return a, dinv


def cell_reference(s0, s1, adj_self, dinv, params):
    """Pure-JAX reference mirroring the unfused PyTorch forward."""
    adj_norm = dinv * adj_self * dinv.T
    s0p = s0 @ params["w0"] + params["b0"]
    s1p = s1 @ params["w1"] + params["b1"]
    st2 = adj_norm @ (s0p @ params["wg0"]) + params["bg0"]
    st3 = adj_norm @ (s1p @ params["wg1"]) + params["bg1"]
    return jax.nn.relu(jnp.concatenate([st2, st3], axis=1))


# ---------------------------------------------------------------------------
if __name__ == "__main__":
    N, E = 64, 256                 # nodes, edges
    HIS_DIM, CUR_DIM = 16, 24
    HIDDEN_DIM = OUT_DIM = 64      # Cell asserts hidden_dim == out_dim
    DROP_PROB = 0.5                # unused by forward, kept for signature parity

    key = jax.random.PRNGKey(0)
    k_s0, k_s1, k_src, k_tgt, k_par = jax.random.split(key, 5)

    s0 = jax.random.normal(k_s0, (N, HIS_DIM), jnp.float32)
    s1 = jax.random.normal(k_s1, (N, CUR_DIM), jnp.float32)
    edge_index = jnp.stack([
        jax.random.randint(k_src, (E,), 0, N),
        jax.random.randint(k_tgt, (E,), 0, N),
    ], axis=0)

    params = init_params(k_par, HIS_DIM, CUR_DIM, HIDDEN_DIM)
    adj_self, dinv = build_adj(edge_index, N)

    out = cell_forward(s0, s1, adj_self, dinv, params)
    out = jax.block_until_ready(out)

    ref = cell_reference(s0, s1, adj_self, dinv, params)
    assert out.shape == (N, 2 * HIDDEN_DIM), out.shape
    assert jnp.allclose(out, ref, atol=2e-4, rtol=2e-4), float(
        jnp.max(jnp.abs(out - ref)))

    print("KERNEL_OK")
</pallas_src>

<mosaic_0001>
module attributes {stable_mosaic.version = 11 : i64} {
  func.func @_cell_kernel(%arg0: memref<64x40xf32, #tpu.memory_space<vmem>>, %arg1: memref<64x64xf32, #tpu.memory_space<vmem>>, %arg2: memref<64x1xf32, #tpu.memory_space<vmem>>, %arg3: memref<40x128xf32, #tpu.memory_space<vmem>>, %arg4: memref<1x128xf32, #tpu.memory_space<vmem>>, %arg5: memref<1x128xf32, #tpu.memory_space<vmem>>, %arg6: memref<64x128xf32, #tpu.memory_space<vmem>>) attributes {dimension_semantics = [], scalar_prefetch = 0 : i64, scratch_operands = 0 : i64, tpu.core_type = #tpu.core_type<tc>} {
    %c0 = arith.constant 0 : index
    %c0_0 = arith.constant 0 : index
    %0 = vector.load %arg0[%c0, %c0_0] : memref<64x40xf32, #tpu.memory_space<vmem>>, vector<64x40xf32>
    %c0_1 = arith.constant 0 : index
    %c0_2 = arith.constant 0 : index
    %1 = vector.load %arg3[%c0_1, %c0_2] : memref<40x128xf32, #tpu.memory_space<vmem>>, vector<40x128xf32>
    %cst = arith.constant dense<0.000000e+00> : vector<64x128xf32>
    %2 = tpu.matmul %0, %1, %cst {dimension_numbers = #tpu.dot_dimension_numbers<[1], [0], [0], [1], [0, 0, 1, 1], [], []>} : vector<64x40xf32>, vector<40x128xf32>, vector<64x128xf32> -> vector<64x128xf32>
    %c0_3 = arith.constant 0 : index
    %c0_4 = arith.constant 0 : index
    %3 = vector.load %arg4[%c0_3, %c0_4] : memref<1x128xf32, #tpu.memory_space<vmem>>, vector<1x128xf32>
    %4 = vector.broadcast %3 : vector<1x128xf32> to vector<64x128xf32>
    %5 = arith.addf %2, %4 : vector<64x128xf32>
    %c0_5 = arith.constant 0 : index
    %c0_6 = arith.constant 0 : index
    %6 = vector.load %arg2[%c0_5, %c0_6] : memref<64x1xf32, #tpu.memory_space<vmem>>, vector<64x1xf32>
    %7 = vector.broadcast %6 : vector<64x1xf32> to vector<64x128xf32>
    %8 = arith.mulf %7, %5 : vector<64x128xf32>
    %c0_7 = arith.constant 0 : index
    %c0_8 = arith.constant 0 : index
    %9 = vector.load %arg1[%c0_7, %c0_8] : memref<64x64xf32, #tpu.memory_space<vmem>>, vector<64x64xf32>
    %cst_9 = arith.constant dense<0.000000e+00> : vector<64x128xf32>
    %10 = tpu.matmul %9, %8, %cst_9 {dimension_numbers = #tpu.dot_dimension_numbers<[1], [0], [0], [1], [0, 0, 1, 1], [], []>} : vector<64x64xf32>, vector<64x128xf32>, vector<64x128xf32> -> vector<64x128xf32>
    %11 = vector.broadcast %6 : vector<64x1xf32> to vector<64x128xf32>
    %12 = arith.mulf %11, %10 : vector<64x128xf32>
    %c0_10 = arith.constant 0 : index
    %c0_11 = arith.constant 0 : index
    %13 = vector.load %arg5[%c0_10, %c0_11] : memref<1x128xf32, #tpu.memory_space<vmem>>, vector<1x128xf32>
    %14 = vector.broadcast %13 : vector<1x128xf32> to vector<64x128xf32>
    %15 = arith.addf %12, %14 : vector<64x128xf32>
    %cst_12 = arith.constant 0.000000e+00 : f32
    %16 = vector.broadcast %cst_12 : f32 to vector<64x128xf32>
    %17 = arith.maximumf %15, %16 : vector<64x128xf32>
    %c0_13 = arith.constant 0 : index
    %c0_14 = arith.constant 0 : index
    %18 = vector.load %arg6[%c0_13, %c0_14] : memref<64x128xf32, #tpu.memory_space<vmem>>, vector<64x128xf32>
    tpu.vector_store %arg6[%c0_13, %c0_14], %17 {strides = array<i32>} : memref<64x128xf32, #tpu.memory_space<vmem>>, vector<64x128xf32>,
    return
  }
}

</mosaic_0001>

<llo_original>
// kernel: tpu_custom_call.1
$region0: #{tpu_custom_call.1}
  #allocation0 [shape = 'u32[]', space=smem, size = 0x4, offset = 0x4, fixed_abs, tag = 'smem constant byte address 0x4 - core index']
  #allocation1 [shape = 'u32[144,128]{1,0:T(1,128)}', space=vmem, size = 0x12000, scoped, tag = 'internal scratch']
  %s0 = inlined_call_operand.vmem [shape: f32[64,40], index: 0, kind: input, shape index: {}]
  %s1 = inlined_call_operand.vmem [shape: f32[64,64], index: 1, kind: input, shape index: {}]
  %s2 = inlined_call_operand.vmem [shape: f32[64,1], index: 2, kind: input, shape index: {}]
  %s3 = inlined_call_operand.vmem [shape: f32[40,128], index: 3, kind: input, shape index: {}]
  %s4 = inlined_call_operand.vmem [shape: f32[1,128], index: 4, kind: input, shape index: {}]
  %s5 = inlined_call_operand.vmem [shape: f32[1,128], index: 5, kind: input, shape index: {}]
  %s6 = inlined_call_operand.hbm [shape: f32[64,128], index: 6, kind: output, shape index: {}]
  %s7 = sld [smem:[#allocation0]]
  $region34: #{tpu_custom_call.1} parent=0
    _
  %s9 = ssub.s32 1, %s7
  %s10 = scalar_select 0, %s9, %s7
  $region1: #{tpu_custom_call.1} parent=0
    #allocation2 [shape = 'u8[32768]{0}', space=vmem, size = 0x8000, scoped, tag = 'output window, operand 0, single buffered']
    #allocation3 [shape = 's32[1]{0}', space=sflag, size = 0x4, scoped, tag = 'scoped memory for tpu_custom_call.1']
    %11 = vsyncpa [#allocation3], 0
    // Predicated region
    $region2: #{tpu_custom_call.1} parent=1 // pred_check
      _
    $region3: #{tpu_custom_call.1} parent=1 // pred_check_branch
      %13 = sbr.rel (0) target = $region5
    $region4: #{tpu_custom_call.1} parent=1 // pred_region
      _
    $region5: #{tpu_custom_call.1} parent=1 // pred_fallthru
      _
    // Predicated region
    $region6: #{tpu_custom_call.1} parent=1 // pred_check
      _
    $region7: #{tpu_custom_call.1} parent=1 // pred_check_branch
      %15 = sbr.rel (0) target = $region9
    $region8: #{tpu_custom_call.1} parent=1 // pred_region
      _
    $region9: #{tpu_custom_call.1} parent=1 // pred_fallthru
      _
    // Predicated region
    $region10: #{tpu_custom_call.1} parent=1 // pred_check
      _
    $region11: #{tpu_custom_call.1} parent=1 // pred_check_branch
      %17 = sbr.rel (0) target = $region13
    $region12: #{tpu_custom_call.1} parent=1 // pred_region
      _
    $region13: #{tpu_custom_call.1} parent=1 // pred_fallthru
      _
    // Predicated region
    $region14: #{tpu_custom_call.1} parent=1 // pred_check
      _
    $region15: #{tpu_custom_call.1} parent=1 // pred_check_branch
      %19 = sbr.rel (0) target = $region17
    $region16: #{tpu_custom_call.1} parent=1 // pred_region
      _
    $region17: #{tpu_custom_call.1} parent=1 // pred_fallthru
      _
    // Predicated region
    $region18: #{tpu_custom_call.1} parent=1 // pred_check
      _
    $region19: #{tpu_custom_call.1} parent=1 // pred_check_branch
      %21 = sbr.rel (0) target = $region21
    $region20: #{tpu_custom_call.1} parent=1 // pred_region
      _
    $region21: #{tpu_custom_call.1} parent=1 // pred_fallthru
      _
    // Predicated region
    $region22: #{tpu_custom_call.1} parent=1 // pred_check
      _
    $region23: #{tpu_custom_call.1} parent=1 // pred_check_branch
      %23 = sbr.rel (0) target = $region25
    $region24: #{tpu_custom_call.1} parent=1 // pred_region
      _
    $region25: #{tpu_custom_call.1} parent=1 // pred_fallthru
      _
    %v24 = vld [vmem:[%s0] sm:$0xff]
    %v25 = vld [vmem:[%s0 + $0x8] sm:$0xff]
    %v26 = vld [vmem:[%s0 + $0x10] sm:$0xff]
    %v27 = vld [vmem:[%s0 + $0x18] sm:$0xff]
    %v28 = vld [vmem:[%s0 + $0x20] sm:$0xff]
    %v29 = vld [vmem:[%s0 + $0x28] sm:$0xff]
    %v30 = vld [vmem:[%s0 + $0x30] sm:$0xff]
    %v31 = vld [vmem:[%s0 + $0x38] sm:$0xff]
    %v32 = vld [vmem:[%s3] sm:$0xff]
    %v33 = vld [vmem:[%s3 + $0x8] sm:$0xff]
    %v34 = vld [vmem:[%s3 + $0x10] sm:$0xff]
    %v35 = vld [vmem:[%s3 + $0x18] sm:$0xff]
    %v36 = vld [vmem:[%s3 + $0x20] sm:$0xff]
    %v37 = vld [vmem:[%s4] sm:$0x1]
    %v39 = vlaneseq
    %v40 = vshrl.u32 %v39, 7
    %v41 = vsub.s32 0, %v40
    %v42 = vrot.slane %v37, %v41
    %vm44 = vcmask 326656
    %v46 = vsel %vm44, %v24, 0
    %v49 = vsel %vm44, %v25, 0
    %v52 = vsel %vm44, %v26, 0
    %v55 = vsel %vm44, %v27, 0
    %v58 = vsel %vm44, %v28, 0
    %v61 = vsel %vm44, %v29, 0
    %v64 = vsel %vm44, %v30, 0
    %v67 = vsel %vm44, %v31, 0
    %69 = vmatprep.subr.mxu0 0.0
    %70 = vmatpush1.msra.mxu0 %v32
    %71 = vmatprep.subr.mxu0 0.0
    %72 = vmatpush1.msra.mxu0 %v33
    %73 = vmatprep.subr.mxu0 0.0
    %74 = vmatpush1.msra.mxu0 %v34
    %75 = vmatprep.subr.mxu0 0.0
    %76 = vmatpush1.msra.mxu0 %v35
    %77 = vmatprep.subr.mxu0 0.0
    %78 = vmatpush1.msra.mxu0 %v36
    %79 = vmatprep.subr.mxu0 0.0
    %80 = vmatpush1.msra.mxu0 0.0
    %81 = vmatprep.subr.mxu0 0.0
    %82 = vmatpush1.msra.mxu0 0.0
    %83 = vmatprep.subr.mxu0 0.0
    %84 = vmatpush1.msra.mxu0 0.0
    %85 = vmatprep.subr.mxu0 0.0
    %86 = vmatpush1.msra.mxu0 0.0
    %87 = vmatprep.subr.mxu0 0.0
    %88 = vmatpush1.msra.mxu0 0.0
    %89 = vmatprep.subr.mxu0 0.0
    %90 = vmatpush1.msra.mxu0 0.0
    %91 = vmatprep.subr.mxu0 0.0
    %92 = vmatpush1.msra.mxu0 0.0
    %93 = vmatprep.subr.mxu0 0.0
    %94 = vmatpush1.msra.mxu0 0.0
    %95 = vmatprep.subr.mxu0 0.0
    %96 = vmatpush1.msra.mxu0 0.0
    %97 = vmatprep.subr.mxu0 0.0
    %98 = vmatpush1.msra.mxu0 0.0
    %99 = vmatprep.subr.mxu0 0.0
    %100 = vmatpush1.msra.mxu0 0.0
    %101 = vmatprep.subr.mxu0 0.0
    %102 = vmatpush1.msra.mxu0 0.0
    %103 = vmatprep.subr.mxu0 0.0
    %104 = vmatpush1.msra.mxu0 0.0
    %105 = vmatprep.subr.mxu0 0.0
    %106 = vmatpush1.msra.mxu0 0.0
    %107 = vmatprep.subr.mxu0 0.0
    %108 = vmatpush1.msra.mxu0 0.0
    %109 = vmatprep.subr.mxu0 0.0
    %110 = vmatpush1.msra.mxu0 0.0
    %111 = vmatprep.subr.mxu0 0.0
    %112 = vmatpush1.msra.mxu0 0.0
    %113 = vmatprep.subr.mxu0 0.0
    %114 = vmatpush1.msra.mxu0 0.0
    %115 = vmatprep.subr.mxu0 0.0
    %116 = vmatpush1.msra.mxu0 0.0
    %117 = vmatprep.subr.mxu0 0.0
    %118 = vmatpush1.msra.mxu0 0.0
    %119 = vmatprep.subr.mxu0 0.0
    %120 = vmatpush1.msra.mxu0 0.0
    %121 = vmatprep.subr.mxu0 0.0
    %122 = vmatpush1.msra.mxu0 0.0
    %123 = vmatprep.subr.mxu0 0.0
    %124 = vmatpush1.msra.mxu0 0.0
    %125 = vmatprep.subr.mxu0 0.0
    %126 = vmatpush1.msra.mxu0 0.0
    %127 = vmatprep.subr.mxu0 0.0
    %128 = vmatpush1.msra.mxu0 0.0
    %129 = vmatprep.subr.mxu0 0.0
    %130 = vmatpush1.msra.mxu0 0.0
    %131 = vmatprep.subr.mxu0 0.0
    %132 = vmatpush1.msra.mxu0 0.0
    %133 = vmatprep.mubr.f32.mxu0 0.0
    %134 = vmatmul.mubr.f32.gmra.mrb[0].mxu0 %v46
    %v135 = vpop.f32.mrb[0].mxu0
    %v136 = vadd.f32 %v42, %v135
    %v137 = vpop.f32.mrb[0].mxu0
    %138 = vmatprep.mubr.f32.mxu0 0.0
    %139 = vmatmul.mubr.f32.gmra.mrb[0].mxu0 %v49
    %v140 = vpop.f32.mrb[0].mxu0
    %v141 = vadd.f32 %v42, %v140
    %v142 = vpop.f32.mrb[0].mxu0
    %143 = vmatprep.mubr.f32.mxu0 0.0
    %144 = vmatmul.mubr.f32.gmra.mrb[0].mxu0 %v52
    %v145 = vpop.f32.mrb[0].mxu0
    %v146 = vadd.f32 %v42, %v145
    %v147 = vpop.f32.mrb[0].mxu0
    %148 = vmatprep.mubr.f32.mxu0 0.0
    %149 = vmatmul.mubr.f32.gmra.mrb[0].mxu0 %v55
    %v150 = vpop.f32.mrb[0].mxu0
    %v151 = vadd.f32 %v42, %v150
    %v152 = vpop.f32.mrb[0].mxu0
    %153 = vmatprep.mubr.f32.mxu0 0.0
    %154 = vmatmul.mubr.f32.gmra.mrb[0].mxu0 %v58
    %v155 = vpop.f32.mrb[0].mxu0
    %v156 = vadd.f32 %v42, %v155
    %v157 = vpop.f32.mrb[0].mxu0
    %158 = vmatprep.mubr.f32.mxu0 0.0
    %159 = vmatmul.mubr.f32.gmra.mrb[0].mxu0 %v61
    %v160 = vpop.f32.mrb[0].mxu0
    %v161 = vadd.f32 %v42, %v160
    %v162 = vpop.f32.mrb[0].mxu0
    %163 = vmatprep.mubr.f32.mxu0 0.0
    %164 = vmatmul.mubr.f32.gmra.mrb[0].mxu0 %v64
    %v165 = vpop.f32.mrb[0].mxu0
    %v166 = vadd.f32 %v42, %v165
    %v167 = vpop.f32.mrb[0].mxu0
    %168 = vmatprep.mubr.f32.mxu0 0.0
    %169 = vmatmul.mubr.f32.gmra.mrb[0].mxu0 %v67
    %v170 = vpop.f32.mrb[0].mxu0
    %v171 = vadd.f32 %v42, %v170
    %v172 = vpop.f32.mrb[0].mxu0
    %173 = vdwg.mxu0
    %v174 = vld [vmem:[%s2] sm:$0xff]
    %v175 = vld [vmem:[%s2 + $0x8] sm:$0xff]
    %v176 = vld [vmem:[%s2 + $0x10] sm:$0xff]
    %v177 = vld [vmem:[%s2 + $0x18] sm:$0xff]
    %v178 = vld [vmem:[%s2 + $0x20] sm:$0xff]
    %v179 = vld [vmem:[%s2 + $0x28] sm:$0xff]
    %v180 = vld [vmem:[%s2 + $0x30] sm:$0xff]
    %v181 = vld [vmem:[%s2 + $0x38] sm:$0xff]
    %183 = vset.pattern.permute.xlu0 0
    %184 = vperm.xlu0 %183, %v174
    %v185 = vpop.permute.xlu0 %184
    %188 = vset.pattern.permute.xlu0 0
    %189 = vperm.xlu0 %188, %v175
    %v190 = vpop.permute.xlu0 %189
    %193 = vset.pattern.permute.xlu0 0
    %194 = vperm.xlu0 %193, %v176
    %v195 = vpop.permute.xlu0 %194
    %198 = vset.pattern.permute.xlu0 0
    %199 = vperm.xlu0 %198, %v177
    %v200 = vpop.permute.xlu0 %199
    %203 = vset.pattern.permute.xlu0 0
    %204 = vperm.xlu0 %203, %v178
    %v205 = vpop.permute.xlu0 %204
    %208 = vset.pattern.permute.xlu0 0
    %209 = vperm.xlu0 %208, %v179
    %v210 = vpop.permute.xlu0 %209
    %213 = vset.pattern.permute.xlu0 0
    %214 = vperm.xlu0 %213, %v180
    %v215 = vpop.permute.xlu0 %214
    %218 = vset.pattern.permute.xlu0 0
    %219 = vperm.xlu0 %218, %v181
    %v220 = vpop.permute.xlu0 %219
    %v222 = vmul.f32 %v185, %v136
    %v223 = vmul.f32 %v190, %v141
    %v224 = vmul.f32 %v195, %v146
    %v225 = vmul.f32 %v200, %v151
    %v226 = vmul.f32 %v205, %v156
    %v227 = vmul.f32 %v210, %v161
    %v228 = vmul.f32 %v215, %v166
    %v229 = vmul.f32 %v220, %v171
    %v230 = vld [vmem:[%s1] sm:$0xff]
    %v231 = vld [vmem:[%s1 + $0x8] sm:$0xff]
    %v232 = vld [vmem:[%s1 + $0x10] sm:$0xff]
    %v233 = vld [vmem:[%s1 + $0x18] sm:$0xff]
    %v234 = vld [vmem:[%s1 + $0x20] sm:$0xff]
    %v235 = vld [vmem:[%s1 + $0x28] sm:$0xff]
    %v236 = vld [vmem:[%s1 + $0x30] sm:$0xff]
    %v237 = vld [vmem:[%s1 + $0x38] sm:$0xff]
    %vm238 = vcmask 523264
    %v240 = vsel %vm238, %v230, 0
    %v243 = vsel %vm238, %v231, 0
    %v246 = vsel %vm238, %v232, 0
    %v249 = vsel %vm238, %v233, 0
    %v252 = vsel %vm238, %v234, 0
    %v255 = vsel %vm238, %v235, 0
    %v258 = vsel %vm238, %v236, 0
    %v261 = vsel %vm238, %v237, 0
    %263 = vmatprep.subr.mxu0 0.0
    %264 = vmatpush1.msra.mxu0 %v222
    %265 = vmatprep.subr.mxu0 0.0
    %266 = vmatpush1.msra.mxu0 %v223
    %267 = vmatprep.subr.mxu0 0.0
    %268 = vmatpush1.msra.mxu0 %v224
    %269 = vmatprep.subr.mxu0 0.0
    %270 = vmatpush1.msra.mxu0 %v225
    %271 = vmatprep.subr.mxu0 0.0
    %272 = vmatpush1.msra.mxu0 %v226
    %273 = vmatprep.subr.mxu0 0.0
    %274 = vmatpush1.msra.mxu0 %v227
    %275 = vmatprep.subr.mxu0 0.0
    %276 = vmatpush1.msra.mxu0 %v228
    %277 = vmatprep.subr.mxu0 0.0
    %278 = vmatpush1.msra.mxu0 %v229
    %279 = vmatprep.subr.mxu0 0.0
    %280 = vmatpush1.msra.mxu0 0.0
    %281 = vmatprep.subr.mxu0 0.0
    %282 = vmatpush1.msra.mxu0 0.0
    %283 = vmatprep.subr.mxu0 0.0
    %284 = vmatpush1.msra.mxu0 0.0
    %285 = vmatprep.subr.mxu0 0.0
    %286 = vmatpush1.msra.mxu0 0.0
    %287 = vmatprep.subr.mxu0 0.0
    %288 = vmatpush1.msra.mxu0 0.0
    %289 = vmatprep.subr.mxu0 0.0
    %290 = vmatpush1.msra.mxu0 0.0
    %291 = vmatprep.subr.mxu0 0.0
    %292 = vmatpush1.msra.mxu0 0.0
    %293 = vmatprep.subr.mxu0 0.0
    %294 = vmatpush1.msra.mxu0 0.0
    %295 = vmatprep.subr.mxu0 0.0
    %296 = vmatpush1.msra.mxu0 0.0
    %297 = vmatprep.subr.mxu0 0.0
    %298 = vmatpush1.msra.mxu0 0.0
    %299 = vmatprep.subr.mxu0 0.0
    %300 = vmatpush1.msra.mxu0 0.0
    %301 = vmatprep.subr.mxu0 0.0
    %302 = vmatpush1.msra.mxu0 0.0
    %303 = vmatprep.subr.mxu0 0.0
    %304 = vmatpush1.msra.mxu0 0.0
    %305 = vmatprep.subr.mxu0 0.0
    %306 = vmatpush1.msra.mxu0 0.0
    %307 = vmatprep.subr.mxu0 0.0
    %308 = vmatpush1.msra.mxu0 0.0
    %309 = vmatprep.subr.mxu0 0.0
    %310 = vmatpush1.msra.mxu0 0.0
    %311 = vmatprep.subr.mxu0 0.0
    %312 = vmatpush1.msra.mxu0 0.0
    %313 = vmatprep.subr.mxu0 0.0
    %314 = vmatpush1.msra.mxu0 0.0
    %315 = vmatprep.subr.mxu0 0.0
    %316 = vmatpush1.msra.mxu0 0.0
    %317 = vmatprep.subr.mxu0 0.0
    %318 = vmatpush1.msra.mxu0 0.0
    %319 = vmatprep.subr.mxu0 0.0
    %320 = vmatpush1.msra.mxu0 0.0
    %321 = vmatprep.subr.mxu0 0.0
    %322 = vmatpush1.msra.mxu0 0.0
    %323 = vmatprep.subr.mxu0 0.0
    %324 = vmatpush1.msra.mxu0 0.0
    %325 = vmatprep.subr.mxu0 0.0
    %326 = vmatpush1.msra.mxu0 0.0
    %327 = vmatprep.mubr.f32.mxu0 0.0
    %328 = vmatmul.mubr.f32.gmra.mrb[0].mxu0 %v240
    %v329 = vpop.f32.mrb[0].mxu0
    %v330 = vadd.f32 0.0, %v329
    %v331 = vpop.f32.mrb[0].mxu0
    %332 = vmatprep.mubr.f32.mxu0 0.0
    %333 = vmatmul.mubr.f32.gmra.mrb[0].mxu0 %v243
    %v334 = vpop.f32.mrb[0].mxu0
    %v335 = vadd.f32 0.0, %v334
    %v336 = vpop.f32.mrb[0].mxu0
    %337 = vmatprep.mubr.f32.mxu0 0.0
    %338 = vmatmul.mubr.f32.gmra.mrb[0].mxu0 %v246
    %v339 = vpop.f32.mrb[0].mxu0
    %v340 = vadd.f32 0.0, %v339
    %v341 = vpop.f32.mrb[0].mxu0
    %342 = vmatprep.mubr.f32.mxu0 0.0
    %343 = vmatmul.mubr.f32.gmra.mrb[0].mxu0 %v249
    %v344 = vpop.f32.mrb[0].mxu0
    %v345 = vadd.f32 0.0, %v344
    %v346 = vpop.f32.mrb[0].mxu0
    %347 = vmatprep.mubr.f32.mxu0 0.0
    %348 = vmatmul.mubr.f32.gmra.mrb[0].mxu0 %v252
    %v349 = vpop.f32.mrb[0].mxu0
    %v350 = vadd.f32 0.0, %v349
    %v351 = vpop.f32.mrb[0].mxu0
    %352 = vmatprep.mubr.f32.mxu0 0.0
    %353 = vmatmul.mubr.f32.gmra.mrb[0].mxu0 %v255
    %v354 = vpop.f32.mrb[0].mxu0
    %v355 = vadd.f32 0.0, %v354
    %v356 = vpop.f32.mrb[0].mxu0
    %357 = vmatprep.mubr.f32.mxu0 0.0
    %358 = vmatmul.mubr.f32.gmra.mrb[0].mxu0 %v258
    %v359 = vpop.f32.mrb[0].mxu0
    %v360 = vadd.f32 0.0, %v359
    %v361 = vpop.f32.mrb[0].mxu0
    %362 = vmatprep.mubr.f32.mxu0 0.0
    %363 = vmatmul.mubr.f32.gmra.mrb[0].mxu0 %v261
    %v364 = vpop.f32.mrb[0].mxu0
    %v365 = vadd.f32 0.0, %v364
    %v366 = vpop.f32.mrb[0].mxu0
    %367 = vdwg.mxu0
    %v368 = vmul.f32 %v185, %v330
    %v369 = vmul.f32 %v190, %v335
    %v370 = vmul.f32 %v195, %v340
    %v371 = vmul.f32 %v200, %v345
    %v372 = vmul.f32 %v205, %v350
    %v373 = vmul.f32 %v210, %v355
    %v374 = vmul.f32 %v215, %v360
    %v375 = vmul.f32 %v220, %v365
    %v376 = vld [vmem:[%s5] sm:$0x1]
    %v378 = vlaneseq
    %v379 = vshrl.u32 %v378, 7
    %v380 = vsub.s32 0, %v379
    %v381 = vrot.slane %v376, %v380
    %v383 = vadd.f32 %v368, %v381
    %v384 = vadd.f32 %v369, %v381
    %v385 = vadd.f32 %v370, %v381
    %v386 = vadd.f32 %v371, %v381
    %v387 = vadd.f32 %v372, %v381
    %v388 = vadd.f32 %v373, %v381
    %v389 = vadd.f32 %v374, %v381
    %v390 = vadd.f32 %v375, %v381
    %v391 = vmax.f32 %v383, 0.0
    %v392 = vmax.f32 %v384, 0.0
    %v393 = vmax.f32 %v385, 0.0
    %v394 = vmax.f32 %v386, 0.0
    %v395 = vmax.f32 %v387, 0.0
    %v396 = vmax.f32 %v388, 0.0
    %v397 = vmax.f32 %v389, 0.0
    %v398 = vmax.f32 %v390, 0.0
    %399 = vst [vmem:[#allocation2] sm:$0xff] %v391
    %400 = vst [vmem:[#allocation2 + $0x8] sm:$0xff] %v392
    %401 = vst [vmem:[#allocation2 + $0x10] sm:$0xff] %v393
    %402 = vst [vmem:[#allocation2 + $0x18] sm:$0xff] %v394
    %403 = vst [vmem:[#allocation2 + $0x20] sm:$0xff] %v395
    %404 = vst [vmem:[#allocation2 + $0x28] sm:$0xff] %v396
    %405 = vst [vmem:[#allocation2 + $0x30] sm:$0xff] %v397
    %406 = vst [vmem:[#allocation2 + $0x38] sm:$0xff] %v398
    // Predicated region
    $region26: #{tpu_custom_call.1} parent=1 // pred_check
      _
    $region27: #{tpu_custom_call.1} parent=1 // pred_check_branch
      %408 = sbr.rel (0) target = $region29
    $region28: #{tpu_custom_call.1} parent=1 // pred_region
      %s410 = ssub.s32 1024, 1024
      %411 = vsyncadd [#allocation3], %s410
      %s412 = sshll.u32 [#allocation2], 4
      %s413 = int_to_ptr.vmem [resolvable:$true] %s412
      %418 = dma.vmem_to_hbm [thread:$0]  %s413, 1024, %s6, [#allocation3], 128, 128, 8
    $region29: #{tpu_custom_call.1} parent=1 // pred_fallthru
      _
    // Predicated region
    $region30: #{tpu_custom_call.1} parent=1 // pred_check
      _
    $region31: #{tpu_custom_call.1} parent=1 // pred_check_branch
      %420 = sbr.rel (0) target = $region33
    $region32: #{tpu_custom_call.1} parent=1 // pred_region
      %421 = dma.done [#allocation3], 1024
    $region33: #{tpu_custom_call.1} parent=1 // pred_fallthru
      _
    %422 = vsyncpa [#allocation3], 1

</llo_original>
